<compile_context>
chip_gen: v7x
topology: tpu7x:2x2x1
jax: 0.10.0
libtpu: 0.0.40
codegen_flags: <defaults>
</compile_context>

<pallas_src>
import functools

import jax
import jax.numpy as jnp
from jax.experimental import pallas as pl
from jax.experimental.pallas import tpu as pltpu


def _round_up(n: int, m: int) -> int:
    return ((n + m - 1) // m) * m


def _cached_pad_kernel(pad_ref, x_ref, out_ref, newpad_ref, *, bs, needs_row_mask):
    """One batch tile: concat cache + x, emit new cache rows.

    pad_ref:    (BT, P)      cache rows for this batch tile (aliased w/ output)
    x_ref:      (BT, T)      input rows for this batch tile
    out_ref:    (BT, P + T)  concatenated output rows
    newpad_ref: (BT, P)      new cache rows (same HBM buffer as the pad input)
    """
    bt, P = pad_ref.shape
    T = x_ref.shape[-1]

    pad = pad_ref[...]
    x = x_ref[...]

    # Build the whole output tile in vregs (XLU lane shifts) and issue one
    # dense full-tile store instead of a masked store starting at lane P.
    out_ref[...] = jnp.concatenate([pad, x], axis=-1)

    # New cache = last P samples of the concatenated signal (static branch).
    if T >= P:
        new = x[:, T - P:]
    else:
        new = jnp.concatenate([pad[:, T:], x], axis=-1)

    if needs_row_mask:
        # Cache rows of this tile in [bs, max_batch_size) must keep their old
        # values (PyTorch only updates pad[:bs]); rows past the array end are
        # masked by Pallas on writeback automatically.
        row = (jax.lax.broadcasted_iota(jnp.int32, (bt, P), 0)
               + pl.program_id(0) * bt)
        new = jnp.where(row < bs, new, pad)

    newpad_ref[...] = new


def _choose_batch_tile(bs: int, padding: int, T: int, itemsize: int) -> int:
    """Sublane-aligned batch tile sized to a modest per-stage VMEM budget."""
    # Sublane packing factor: f32 -> 8 rows/vreg, bf16 -> 16, int8/fp8 -> 32.
    sub = 8 * max(1, 4 // itemsize)
    per_row = (3 * padding + 2 * T) * itemsize        # pad + x + out + newpad
    budget = 4 << 20                                  # bytes per pipeline stage
    bt = (budget // max(per_row, 1)) // sub * sub
    bt = min(bt, 1024, _round_up(bs, sub))
    return int(max(bt, sub))


@functools.partial(jax.jit, donate_argnums=(1,))
def cached_padding_1d(x, pad_cache):
    """Functional forward of CachedPadding1d.

    x:         (bs, 1, T)
    pad_cache: (max_batch_size, 1, padding)  -- persistent state (donated)
    returns    (out, new_pad_cache) with out shape (bs, 1, padding + T)
    """
    bs, c, T = x.shape
    max_bs, c2, padding = pad_cache.shape
    assert c == 1 and c2 == 1, "CachedPadding1d only supports mono signals"
    assert bs <= max_bs, "batch size exceeds max_batch_size of the cache"

    if padding == 0:
        return x, pad_cache

    itemsize = jnp.dtype(x.dtype).itemsize
    bt = _choose_batch_tile(bs, padding, T, itemsize)
    nb = pl.cdiv(bs, bt)
    # Only the tile straddling `bs` needs masking; rows in [bs, max_bs) that no
    # grid tile visits keep their old values through input_output_aliases.
    needs_row_mask = (bs < max_bs) and (bs % bt != 0)

    kernel = functools.partial(
        _cached_pad_kernel, bs=bs, needs_row_mask=needs_row_mask)

    per_row = (3 * padding + 2 * T) * itemsize
    bytes_accessed = int(bs * per_row)
    # Per-step VMEM: pad + x + out + newpad blocks, double-buffered.
    vmem_limit = int(min(max(32 << 20, 4 * bt * per_row), 64 << 20))

    out, new_cache = pl.pallas_call(
        kernel,
        out_shape=(
            jax.ShapeDtypeStruct((bs, c, padding + T), x.dtype),
            jax.ShapeDtypeStruct((max_bs, c, padding), pad_cache.dtype),
        ),
        grid=(nb,),
        in_specs=[
            pl.BlockSpec((bt, pl.Squeezed(), padding), lambda i: (i, 0, 0)),
            pl.BlockSpec((bt, pl.Squeezed(), T), lambda i: (i, 0, 0)),
        ],
        out_specs=(
            pl.BlockSpec((bt, pl.Squeezed(), padding + T), lambda i: (i, 0, 0)),
            pl.BlockSpec((bt, pl.Squeezed(), padding), lambda i: (i, 0, 0)),
        ),
        # In-place cache update: full-cache input 0 aliases new-cache output 1.
        input_output_aliases={0: 1},
        compiler_params=pltpu.CompilerParams(
            dimension_semantics=("parallel",),
            vmem_limit_bytes=vmem_limit,
        ),
        cost_estimate=pl.CostEstimate(
            flops=0, transcendentals=0, bytes_accessed=bytes_accessed),
    )(pad_cache, x)

    return out, new_cache


if __name__ == "__main__":
    key = jax.random.PRNGKey(0)
    k1, k2, k3 = jax.random.split(key, 3)

    # ---- Case 1: bs == max_batch_size, T > padding (typical streaming chunk).
    max_bs, P = 2, 4
    bs, C, T = 2, 1, 16
    x = jax.random.normal(k1, (bs, C, T), dtype=jnp.float32)
    # init_cache(): zero buffer of shape (max_batch_size, 1, padding)
    cache = jnp.zeros((max_bs, C, P), dtype=jnp.float32)

    ref1 = jnp.concatenate([jnp.zeros((bs, C, P), jnp.float32), x], axis=-1)
    ref_cache1 = ref1[..., -P:]
    ref2 = jnp.concatenate([ref_cache1, x], axis=-1)
    ref_cache2 = ref2[..., -P:]

    out1, cache = cached_padding_1d(x, cache)      # fresh (zero) cache
    out2, cache = cached_padding_1d(x, cache)      # cached-state path
    out1, out2, cache = jax.block_until_ready((out1, out2, cache))

    assert out1.shape == (bs, C, P + T)
    assert jnp.array_equal(out1, ref1)
    assert jnp.array_equal(out2, ref2)
    assert jnp.array_equal(cache, ref_cache2)

    # ---- Case 2: bs < max_batch_size and T < padding
    # (exercises the row-mask path and the short-chunk cache branch; rows
    #  [bs, max_batch_size) of the cache must be preserved).
    max_bs2, P2 = 5, 8
    bs2, T2 = 3, 6
    x2 = jax.random.normal(k2, (bs2, 1, T2), dtype=jnp.float32)
    cache2 = jax.random.normal(k3, (max_bs2, 1, P2), dtype=jnp.float32)

    ref_out = jnp.concatenate([cache2[:bs2], x2], axis=-1)
    ref_cache = cache2.at[:bs2].set(ref_out[..., -P2:])

    out3, cache2_new = cached_padding_1d(x2, cache2)
    out3, cache2_new = jax.block_until_ready((out3, cache2_new))

    assert out3.shape == (bs2, 1, P2 + T2)
    assert jnp.array_equal(out3, ref_out)
    assert jnp.array_equal(cache2_new, ref_cache)

    print("KERNEL_OK")
</pallas_src>

<mosaic_0001>
module attributes {stable_mosaic.version = 11 : i64} {
  func.func @_cached_pad_kernel(%arg0: i32, %arg1: memref<8x1x4xf32, #tpu.memory_space<vmem>>, %arg2: memref<8x1x16xf32, #tpu.memory_space<vmem>>, %arg3: memref<8x1x20xf32, #tpu.memory_space<vmem>>, %arg4: memref<8x1x4xf32, #tpu.memory_space<vmem>>) attributes {dimension_semantics = [#tpu.dimension_semantics<parallel>], iteration_bounds = array<i64: 1>, scalar_prefetch = 0 : i64, scratch_operands = 0 : i64, tpu.core_type = #tpu.core_type<tc>, window_params = [{transform_indices = @transform_0, window_bounds = array<i64: 8, 1, 4>}, {transform_indices = @transform_1, window_bounds = array<i64: 8, 1, 16>}, {transform_indices = @transform_2, window_bounds = array<i64: 8, 1, 20>}, {transform_indices = @transform_3, window_bounds = array<i64: 8, 1, 4>}]} {
    %c0 = arith.constant 0 : index
    %c0_0 = arith.constant 0 : index
    %c0_1 = arith.constant 0 : index
    %0 = vector.load %arg1[%c0, %c0_0, %c0_1] : memref<8x1x4xf32, #tpu.memory_space<vmem>>, vector<8x1x4xf32>
    %1 = vector.shape_cast %0 : vector<8x1x4xf32> to vector<8x4xf32>
    %c0_2 = arith.constant 0 : index
    %c0_3 = arith.constant 0 : index
    %c0_4 = arith.constant 0 : index
    %2 = vector.load %arg2[%c0_2, %c0_3, %c0_4] : memref<8x1x16xf32, #tpu.memory_space<vmem>>, vector<8x1x16xf32>
    %3 = vector.shape_cast %2 : vector<8x1x16xf32> to vector<8x16xf32>
    %4 = tpu.concatenate %1, %3 in 1 : vector<8x4xf32>, vector<8x16xf32> -> vector<8x20xf32>
    %c0_5 = arith.constant 0 : index
    %c0_6 = arith.constant 0 : index
    %c0_7 = arith.constant 0 : index
    %5 = vector.load %arg3[%c0_5, %c0_6, %c0_7] : memref<8x1x20xf32, #tpu.memory_space<vmem>>, vector<8x1x20xf32>
    %6 = vector.shape_cast %5 : vector<8x1x20xf32> to vector<8x20xf32>
    %7 = vector.shape_cast %4 : vector<8x20xf32> to vector<8x1x20xf32>
    tpu.vector_store %arg3[%c0_5, %c0_6, %c0_7], %7 {strides = array<i32>} : memref<8x1x20xf32, #tpu.memory_space<vmem>>, vector<8x1x20xf32>,
    %8 = vector.extract_strided_slice %3 {offsets = [0, 12], sizes = [8, 4], strides = [1, 1]} : vector<8x16xf32> to vector<8x4xf32>
    %c0_8 = arith.constant 0 : index
    %c0_9 = arith.constant 0 : index
    %c0_10 = arith.constant 0 : index
    %9 = vector.load %arg4[%c0_8, %c0_9, %c0_10] : memref<8x1x4xf32, #tpu.memory_space<vmem>>, vector<8x1x4xf32>
    %10 = vector.shape_cast %9 : vector<8x1x4xf32> to vector<8x4xf32>
    %11 = vector.shape_cast %8 : vector<8x4xf32> to vector<8x1x4xf32>
    tpu.vector_store %arg4[%c0_8, %c0_9, %c0_10], %11 {strides = array<i32>} : memref<8x1x4xf32, #tpu.memory_space<vmem>>, vector<8x1x4xf32>,
    return
  }
  func.func @transform_0(%arg0: i32) -> (i32, i32, i32) {
    %c0_i32 = arith.constant 0 : i32
    %c0_i32_0 = arith.constant 0 : i32
    %c0_i32_1 = arith.constant 0 : i32
    return %arg0, %c0_i32, %c0_i32_0 : i32, i32, i32
  }
  func.func @transform_1(%arg0: i32) -> (i32, i32, i32) {
    %c0_i32 = arith.constant 0 : i32
    %c0_i32_0 = arith.constant 0 : i32
    %c0_i32_1 = arith.constant 0 : i32
    return %arg0, %c0_i32, %c0_i32_0 : i32, i32, i32
  }
  func.func @transform_2(%arg0: i32) -> (i32, i32, i32) {
    %c0_i32 = arith.constant 0 : i32
    %c0_i32_0 = arith.constant 0 : i32
    %c0_i32_1 = arith.constant 0 : i32
    return %arg0, %c0_i32, %c0_i32_0 : i32, i32, i32
  }
  func.func @transform_3(%arg0: i32) -> (i32, i32, i32) {
    %c0_i32 = arith.constant 0 : i32
    %c0_i32_0 = arith.constant 0 : i32
    %c0_i32_1 = arith.constant 0 : i32
    return %arg0, %c0_i32, %c0_i32_0 : i32, i32, i32
  }
}

</mosaic_0001>

<llo_original>
// kernel: cached_padding_1d.1
$region0: #{cached_padding_1d.1}
  #allocation0 [shape = 'u32[]', space=smem, size = 0x4, offset = 0x4, fixed_abs, tag = 'smem constant byte address 0x4 - core index']
  #allocation1 [shape = 'u32[144,128]{1,0:T(1,128)}', space=vmem, size = 0x12000, scoped, tag = 'internal scratch']
  %s0 = inlined_call_operand.hbm [shape: f32[2,1,4], index: 0, kind: input, shape index: {}, may-alias: {0,3}]
  %s1 = inlined_call_operand.hbm [shape: f32[2,1,16], index: 1, kind: input, shape index: {}]
  %s2 = inlined_call_operand.hbm [shape: f32[2,1,20], index: 2, kind: output, shape index: {0}]
  %s3 = inlined_call_operand.hbm [shape: f32[2,1,4], index: 3, kind: output, shape index: {1}, may-alias: {0,3}]
  %4 = xla_tuple %s2, %s3
  %s5 = sld [smem:[#allocation0]]
  $region34: #{cached_padding_1d.1} parent=0
    _
  %s7 = ssub.s32 1, %s5
  %s8 = scalar_select 0, %s7, %s5
  $region1: #{cached_padding_1d.1} parent=0
    #allocation2 [shape = 'u8[4096]{0}', space=vmem, size = 0x1000, scoped, tag = 'input window, operand 0, single buffered']
    #allocation3 [shape = 's32[1]{0}', space=sflag, size = 0x4, scoped, tag = 'scoped memory for cached_padding_1d.1']
    #allocation4 [shape = 's32[1]{0}', space=sflag, size = 0x4, scoped, tag = 'scoped memory for cached_padding_1d.1']
    #allocation5 [shape = 'u8[4096]{0}', space=vmem, size = 0x1000, scoped, tag = 'input window, operand 1, single buffered']
    #allocation6 [shape = 's32[1]{0}', space=sflag, size = 0x4, scoped, tag = 'scoped memory for cached_padding_1d.1']
    #allocation7 [shape = 'u8[4096]{0}', space=vmem, size = 0x1000, scoped, tag = 'output window, operand 0, single buffered']
    #allocation8 [shape = 'u8[4096]{0}', space=vmem, size = 0x1000, scoped, tag = 'output window, operand 1, single buffered']
    #allocation9 [shape = 's32[1]{0}', space=sflag, size = 0x4, scoped, tag = 'scoped memory for cached_padding_1d.1']
    %9 = vsyncpa [#allocation3], 0
    %10 = vsyncpa [#allocation6], 0
    %11 = vsyncpa [#allocation4], 0
    %12 = vsyncpa [#allocation9], 0
    // Predicated region
    $region2: #{cached_padding_1d.1} parent=1 // pred_check
      _
    $region3: #{cached_padding_1d.1} parent=1 // pred_check_branch
      %14 = sbr.rel (0) target = $region5
    $region4: #{cached_padding_1d.1} parent=1 // pred_region
      %s16 = ssub.s32 128, 32
      %17 = vsyncadd [#allocation3], %s16
      %s18 = sshll.u32 [#allocation2], 4
      %s19 = int_to_ptr.vmem [resolvable:$true] %s18
      %24 = dma.hbm_to_vmem [thread:$0]  %s0, 32, %s19, [#allocation3], 16, 16, 1
    $region5: #{cached_padding_1d.1} parent=1 // pred_fallthru
      _
    // Predicated region
    $region6: #{cached_padding_1d.1} parent=1 // pred_check
      _
    $region7: #{cached_padding_1d.1} parent=1 // pred_check_branch
      %26 = sbr.rel (0) target = $region9
    $region8: #{cached_padding_1d.1} parent=1 // pred_region
      %s28 = ssub.s32 128, 32
      %29 = vsyncadd [#allocation6], %s28
      %s30 = sshll.u32 [#allocation5], 4
      %s31 = int_to_ptr.vmem [resolvable:$true] %s30
      %36 = dma.hbm_to_vmem [thread:$0]  %s1, 32, %s31, [#allocation6], 16, 16, 1
    $region9: #{cached_padding_1d.1} parent=1 // pred_fallthru
      _
    // Predicated region
    $region10: #{cached_padding_1d.1} parent=1 // pred_check
      _
    $region11: #{cached_padding_1d.1} parent=1 // pred_check_branch
      %38 = sbr.rel (0) target = $region13
    $region12: #{cached_padding_1d.1} parent=1 // pred_region
      %39 = dma.done [#allocation3], 128
    $region13: #{cached_padding_1d.1} parent=1 // pred_fallthru
      _
    // Predicated region
    $region14: #{cached_padding_1d.1} parent=1 // pred_check
      _
    $region15: #{cached_padding_1d.1} parent=1 // pred_check_branch
      %41 = sbr.rel (0) target = $region17
    $region16: #{cached_padding_1d.1} parent=1 // pred_region
      %42 = dma.done [#allocation6], 128
    $region17: #{cached_padding_1d.1} parent=1 // pred_fallthru
      _
    %v43 = vld [vmem:[#allocation2] sm:$0x1]
    %v44 = vld [vmem:[#allocation2 + $0x1] sm:$0x1]
    %v45 = vld [vmem:[#allocation2 + $0x2] sm:$0x1]
    %v46 = vld [vmem:[#allocation2 + $0x3] sm:$0x1]
    %v47 = vld [vmem:[#allocation2 + $0x4] sm:$0x1]
    %v48 = vld [vmem:[#allocation2 + $0x5] sm:$0x1]
    %v49 = vld [vmem:[#allocation2 + $0x6] sm:$0x1]
    %v50 = vld [vmem:[#allocation2 + $0x7] sm:$0x1]
    %v51 = vld [vmem:[#allocation5] sm:$0x1]
    %v52 = vld [vmem:[#allocation5 + $0x1] sm:$0x1]
    %v53 = vld [vmem:[#allocation5 + $0x2] sm:$0x1]
    %v54 = vld [vmem:[#allocation5 + $0x3] sm:$0x1]
    %v55 = vld [vmem:[#allocation5 + $0x4] sm:$0x1]
    %v56 = vld [vmem:[#allocation5 + $0x5] sm:$0x1]
    %v57 = vld [vmem:[#allocation5 + $0x6] sm:$0x1]
    %v58 = vld [vmem:[#allocation5 + $0x7] sm:$0x1]
    %v67 = vcombine.low %v43, %v44
    %v68 = vcombine.low %v45, %v46
    %v69 = vcombine.low %v47, %v48
    %v70 = vcombine.low %v49, %v50
    %v72 = vunpack.c.l.s4 1966171168
    %v73 = vunpack.c.0.s8 %v72
    %v74 = vlaneseq
    %v75 = vshrl.u32 %v74, 7
    %v76 = vsub.s32 %v73, %v75
    %v77 = vrot.slane %v67, %v76
    %v79 = vunpack.c.l.s4 1966171168
    %v80 = vunpack.c.0.s8 %v79
    %v81 = vlaneseq
    %v82 = vshrl.u32 %v81, 7
    %v83 = vsub.s32 %v80, %v82
    %v84 = vrot.slane %v68, %v83
    %v86 = vunpack.c.l.s4 1966171168
    %v87 = vunpack.c.0.s8 %v86
    %v88 = vlaneseq
    %v89 = vshrl.u32 %v88, 7
    %v90 = vsub.s32 %v87, %v89
    %v91 = vrot.slane %v69, %v90
    %v93 = vunpack.c.l.s4 1966171168
    %v94 = vunpack.c.0.s8 %v93
    %v95 = vlaneseq
    %v96 = vshrl.u32 %v95, 7
    %v97 = vsub.s32 %v94, %v96
    %v98 = vrot.slane %v70, %v97
    %v99 = vcombine.low %v77, %v84
    %v100 = vcombine.low %v91, %v98
    %v102 = vunpack.c.l.s4 1966171168
    %v103 = vunpack.c.0.s8 %v102
    %v104 = vlaneseq
    %v105 = vshrl.u32 %v104, 7
    %v106 = vsub.s32 %v103, %v105
    %v107 = vrot.slane %v99, %v106
    %v109 = vunpack.c.l.s4 1966171168
    %v110 = vunpack.c.0.s8 %v109
    %v111 = vlaneseq
    %v112 = vshrl.u32 %v111, 7
    %v113 = vsub.s32 %v110, %v112
    %v114 = vrot.slane %v100, %v113
    %v115 = vcombine.low %v107, %v114
    %v125 = vcombine.low %v51, %v52
    %v126 = vcombine.low %v53, %v54
    %v127 = vcombine.low %v55, %v56
    %v128 = vcombine.low %v57, %v58
    %v130 = vunpack.c.l.s4 1966171168
    %v131 = vunpack.c.0.s8 %v130
    %v132 = vlaneseq
    %v133 = vshrl.u32 %v132, 7
    %v134 = vsub.s32 %v131, %v133
    %v135 = vrot.slane %v125, %v134
    %v137 = vunpack.c.l.s4 1966171168
    %v138 = vunpack.c.0.s8 %v137
    %v139 = vlaneseq
    %v140 = vshrl.u32 %v139, 7
    %v141 = vsub.s32 %v138, %v140
    %v142 = vrot.slane %v126, %v141
    %v144 = vunpack.c.l.s4 1966171168
    %v145 = vunpack.c.0.s8 %v144
    %v146 = vlaneseq
    %v147 = vshrl.u32 %v146, 7
    %v148 = vsub.s32 %v145, %v147
    %v149 = vrot.slane %v127, %v148
    %v151 = vunpack.c.l.s4 1966171168
    %v152 = vunpack.c.0.s8 %v151
    %v153 = vlaneseq
    %v154 = vshrl.u32 %v153, 7
    %v155 = vsub.s32 %v152, %v154
    %v156 = vrot.slane %v128, %v155
    %v157 = vcombine.low %v135, %v142
    %v158 = vcombine.low %v149, %v156
    %v160 = vunpack.c.l.s4 1966171168
    %v161 = vunpack.c.0.s8 %v160
    %v162 = vlaneseq
    %v163 = vshrl.u32 %v162, 7
    %v164 = vsub.s32 %v161, %v163
    %v165 = vrot.slane %v157, %v164
    %v167 = vunpack.c.l.s4 1966171168
    %v168 = vunpack.c.0.s8 %v167
    %v169 = vlaneseq
    %v170 = vshrl.u32 %v169, 7
    %v171 = vsub.s32 %v168, %v170
    %v172 = vrot.slane %v158, %v171
    %v173 = vcombine.low %v165, %v172
    %174 = vrot.lane.b32.xlu0 %v173, 4
    %v175 = vpop.permute.xlu0 %174
    %vm177 = vcmask 31744
    %v178 = vsel %vm177, %v115, %v175
    %v180 = vcombine.high %v178, %v178
    %v182 = vunpack.c.l.s4 1966171168
    %v183 = vunpack.c.0.s8 %v182
    %v184 = vlaneseq
    %v185 = vshrl.u32 %v184, 7
    %v186 = vsub.s32 %v183, %v185
    %v187 = vrot.slane %v178, %v186
    %v189 = vunpack.c.l.s4 1966171168
    %v190 = vunpack.c.0.s8 %v189
    %v191 = vlaneseq
    %v192 = vshrl.u32 %v191, 7
    %v193 = vsub.s32 %v190, %v192
    %v194 = vrot.slane %v180, %v193
    %v195 = vcombine.high %v187, %v187
    %v196 = vcombine.high %v194, %v194
    %v198 = vunpack.c.l.s4 1966171168
    %v199 = vunpack.c.0.s8 %v198
    %v200 = vlaneseq
    %v201 = vshrl.u32 %v200, 7
    %v202 = vsub.s32 %v199, %v201
    %v203 = vrot.slane %v187, %v202
    %v205 = vunpack.c.l.s4 1966171168
    %v206 = vunpack.c.0.s8 %v205
    %v207 = vlaneseq
    %v208 = vshrl.u32 %v207, 7
    %v209 = vsub.s32 %v206, %v208
    %v210 = vrot.slane %v194, %v209
    %v212 = vunpack.c.l.s4 1966171168
    %v213 = vunpack.c.0.s8 %v212
    %v214 = vlaneseq
    %v215 = vshrl.u32 %v214, 7
    %v216 = vsub.s32 %v213, %v215
    %v217 = vrot.slane %v195, %v216
    %v219 = vunpack.c.l.s4 1966171168
    %v220 = vunpack.c.0.s8 %v219
    %v221 = vlaneseq
    %v222 = vshrl.u32 %v221, 7
    %v223 = vsub.s32 %v220, %v222
    %v224 = vrot.slane %v196, %v223
    %v225 = vcombine.high %v203, %v203
    %v226 = vcombine.high %v210, %v210
    %v227 = vcombine.high %v217, %v217
    %v228 = vcombine.high %v224, %v224
    %vm237 = vcmask 155648
    %238 = vst.msk [vmem:[#allocation7] sm:$0x1] %vm237, %v203
    %239 = vst.msk [vmem:[#allocation7 + $0x1] sm:$0x1] %vm237, %v217
    %240 = vst.msk [vmem:[#allocation7 + $0x2] sm:$0x1] %vm237, %v225
    %241 = vst.msk [vmem:[#allocation7 + $0x3] sm:$0x1] %vm237, %v227
    %242 = vst.msk [vmem:[#allocation7 + $0x4] sm:$0x1] %vm237, %v210
    %243 = vst.msk [vmem:[#allocation7 + $0x5] sm:$0x1] %vm237, %v224
    %244 = vst.msk [vmem:[#allocation7 + $0x6] sm:$0x1] %vm237, %v226
    %245 = vst.msk [vmem:[#allocation7 + $0x7] sm:$0x1] %vm237, %v228
    %v246 = vlaneseq
    %v247 = vshrl.u32 %v246, 7
    %v248 = vsub.s32 0, %v247
    %v249 = vrot.slane %v51, %v248
    %v250 = vlaneseq
    %v251 = vshrl.u32 %v250, 7
    %v252 = vsub.s32 0, %v251
    %v253 = vrot.slane %v52, %v252
    %v254 = vlaneseq
    %v255 = vshrl.u32 %v254, 7
    %v256 = vsub.s32 0, %v255
    %v257 = vrot.slane %v53, %v256
    %v258 = vlaneseq
    %v259 = vshrl.u32 %v258, 7
    %v260 = vsub.s32 0, %v259
    %v261 = vrot.slane %v54, %v260
    %v262 = vlaneseq
    %v263 = vshrl.u32 %v262, 7
    %v264 = vsub.s32 0, %v263
    %v265 = vrot.slane %v55, %v264
    %v266 = vlaneseq
    %v267 = vshrl.u32 %v266, 7
    %v268 = vsub.s32 0, %v267
    %v269 = vrot.slane %v56, %v268
    %v270 = vlaneseq
    %v271 = vshrl.u32 %v270, 7
    %v272 = vsub.s32 0, %v271
    %v273 = vrot.slane %v57, %v272
    %v274 = vlaneseq
    %v275 = vshrl.u32 %v274, 7
    %v276 = vsub.s32 0, %v275
    %v277 = vrot.slane %v58, %v276
    %278 = vrot.lane.b32.xlu0 %v249, 116
    %v279 = vpop.permute.xlu0 %278
    %280 = vrot.lane.b32.xlu0 %v253, 116
    %v281 = vpop.permute.xlu0 %280
    %282 = vrot.lane.b32.xlu0 %v257, 116
    %v283 = vpop.permute.xlu0 %282
    %284 = vrot.lane.b32.xlu0 %v261, 116
    %v285 = vpop.permute.xlu0 %284
    %286 = vrot.lane.b32.xlu0 %v265, 116
    %v287 = vpop.permute.xlu0 %286
    %288 = vrot.lane.b32.xlu0 %v269, 116
    %v289 = vpop.permute.xlu0 %288
    %290 = vrot.lane.b32.xlu0 %v273, 116
    %v291 = vpop.permute.xlu0 %290
    %292 = vrot.lane.b32.xlu0 %v277, 116
    %v293 = vpop.permute.xlu0 %292
    %vm302 = vcmask 24576
    %303 = vst.msk [vmem:[#allocation8] sm:$0x1] %vm302, %v279
    %304 = vst.msk [vmem:[#allocation8 + $0x1] sm:$0x1] %vm302, %v281
    %305 = vst.msk [vmem:[#allocation8 + $0x2] sm:$0x1] %vm302, %v283
    %306 = vst.msk [vmem:[#allocation8 + $0x3] sm:$0x1] %vm302, %v285
    %307 = vst.msk [vmem:[#allocation8 + $0x4] sm:$0x1] %vm302, %v287
    %308 = vst.msk [vmem:[#allocation8 + $0x5] sm:$0x1] %vm302, %v289
    %309 = vst.msk [vmem:[#allocation8 + $0x6] sm:$0x1] %vm302, %v291
    %310 = vst.msk [vmem:[#allocation8 + $0x7] sm:$0x1] %vm302, %v293
    // Predicated region
    $region18: #{cached_padding_1d.1} parent=1 // pred_check
      _
    $region19: #{cached_padding_1d.1} parent=1 // pred_check_branch
      %312 = sbr.rel (0) target = $region21
    $region20: #{cached_padding_1d.1} parent=1 // pred_region
      %s314 = ssub.s32 128, 32
      %315 = vsyncadd [#allocation4], %s314
      %s316 = sshll.u32 [#allocation7], 4
      %s317 = int_to_ptr.vmem [resolvable:$true] %s316
      %322 = dma.vmem_to_hbm [thread:$0]  %s317, 32, %s2, [#allocation4], 16, 16, 1
    $region21: #{cached_padding_1d.1} parent=1 // pred_fallthru
      _
    // Predicated region
    $region22: #{cached_padding_1d.1} parent=1 // pred_check
      _
    $region23: #{cached_padding_1d.1} parent=1 // pred_check_branch
      %324 = sbr.rel (0) target = $region25
    $region24: #{cached_padding_1d.1} parent=1 // pred_region
      %s326 = ssub.s32 128, 32
      %327 = vsyncadd [#allocation9], %s326
      %s328 = sshll.u32 [#allocation8], 4
      %s329 = int_to_ptr.vmem [resolvable:$true] %s328
      %334 = dma.vmem_to_hbm [thread:$0]  %s329, 32, %s3, [#allocation9], 16, 16, 1
    $region25: #{cached_padding_1d.1} parent=1 // pred_fallthru
      _
    // Predicated region
    $region26: #{cached_padding_1d.1} parent=1 // pred_check
      _
    $region27: #{cached_padding_1d.1} parent=1 // pred_check_branch
      %336 = sbr.rel (0) target = $region29
    $region28: #{cached_padding_1d.1} parent=1 // pred_region
      %337 = dma.done [#allocation4], 128
    $region29: #{cached_padding_1d.1} parent=1 // pred_fallthru
      _
    // Predicated region
    $region30: #{cached_padding_1d.1} parent=1 // pred_check
      _
    $region31: #{cached_padding_1d.1} parent=1 // pred_check_branch
      %339 = sbr.rel (0) target = $region33
    $region32: #{cached_padding_1d.1} parent=1 // pred_region
      %340 = dma.done [#allocation9], 128
    $region33: #{cached_padding_1d.1} parent=1 // pred_fallthru
      _
    %341 = vsyncpa [#allocation3], 1
    %342 = vsyncpa [#allocation6], 1
    %343 = vsyncpa [#allocation4], 1
    %344 = vsyncpa [#allocation9], 1

</llo_original>
